<compile_context>
chip_gen: v7x
topology: tpu7x:2x2x1
jax: 0.10.0
libtpu: 0.0.40
codegen_flags: <defaults>
</compile_context>

<pallas_src>
import functools
import math

import jax
import jax.numpy as jnp
from jax import lax
from jax.experimental import pallas as pl
from jax.experimental.pallas import tpu as pltpu

LN_EPS = 1e-5
NEG_INF = -1e9        # finite additive mask value (keeps exp() NaN-free)
MASK_INIT = -1e30     # online-softmax running-max init


# ------------------------------------------------------------ generation-aware defaults
def _device_kind():
    try:
        return jax.devices()[0].device_kind.lower()
    except Exception:
        return ""


_KIND = _device_kind()
_IS_V7 = ("v7" in _KIND) or ("7x" in _KIND)
_IS_V6 = "v6" in _KIND
_IS_V5 = "v5" in _KIND

# v5e/v6e have 128 MiB physical VMEM; v7x only 64 MiB per TensorCore -> keep headroom.
if _IS_V7:
    _VMEM_LIMIT = 48 * 1024 * 1024
elif _IS_V5 or _IS_V6:
    _VMEM_LIMIT = 96 * 1024 * 1024
else:
    _VMEM_LIMIT = 32 * 1024 * 1024      # unknown chip / interpret: conservative

# MXU is 256-wide on v6e/v7x (fill it), 128-wide on v5e.
_FLASH_TK_TARGET = 256 if (_IS_V6 or _IS_V7) else 128
# v5e has the lowest HBM BW -> bigger K tiles to cut weight re-streams.
_LIN_TK_TARGET = 1024 if (_IS_V5 and not _IS_V6) else 512


# ----------------------------------------------------------------------------- helpers
def _gelu_exact(x):
    # exact (erf-based) GELU, matching torch.nn.GELU() default
    return 0.5 * x * (1.0 + lax.erf(x * (1.0 / math.sqrt(2.0))))


def _pick_tile(dim, target, align):
    """Largest tile <= target that divides `dim` and is `align`-aligned, else the full dim.

    A full-dim block always satisfies the (8,128) tiling rule; an aligned divisor too.
    (For awkward non-power-of-2 dims this falls back to the full dimension — acceptable
    for the shapes used here; a padding path would be needed for huge odd dims.)
    """
    if dim <= target:
        return dim
    t = (target // align) * align
    while t >= align:
        if dim % t == 0:
            return t
        t -= align
    return dim


# ------------------------------------------------------------------ tiled linear kernel
def _linear_kernel(x_ref, w_ref, b_ref, *rest, activation, has_residual):
    """y = act(x @ W + b) [+ residual], accumulated over the K grid axis in f32 VMEM."""
    if has_residual:
        r_ref, o_ref, acc_ref = rest
    else:
        o_ref, acc_ref = rest

    k = pl.program_id(2)

    @pl.when(k == 0)
    def _():
        acc_ref[...] = jnp.zeros_like(acc_ref)

    acc_ref[...] += jnp.dot(x_ref[...], w_ref[...], preferred_element_type=jnp.float32)

    @pl.when(k == pl.num_programs(2) - 1)
    def _():
        y = acc_ref[...] + b_ref[...]          # bias broadcast, f32
        if activation == "gelu":
            y = _gelu_exact(y)                 # f32 VPU/EUP math (v5e-safe)
        if has_residual:
            y = y + r_ref[...]                 # f32 residual stream
        o_ref[...] = y.astype(o_ref.dtype)


def linear_pallas(x, w, b, *, residual=None, activation=None, out_dtype=jnp.float32,
                  tm_target=512, tn_target=256, tk_target=None):
    """Tiled  y = act(x @ W + b) [+ residual]  with bf16 MXU operands, f32 accumulation."""
    if tk_target is None:
        tk_target = _LIN_TK_TARGET
    M, K = x.shape
    K2, N = w.shape
    assert K == K2
    tm = _pick_tile(M, tm_target, 16)     # 16-aligned: bf16 packs 2 rows / sublane
    tn = _pick_tile(N, tn_target, 128)    # lane-dense output slabs
    tk = _pick_tile(K, tk_target, 128)
    grid = (M // tm, N // tn, K // tk)

    x_bf = x.astype(jnp.bfloat16)         # no-op when the producer already emitted bf16
    w_bf = w.astype(jnp.bfloat16)

    in_specs = [
        pl.BlockSpec((tm, tk), lambda i, j, k: (i, k)),
        pl.BlockSpec((tk, tn), lambda i, j, k: (k, j)),
        pl.BlockSpec((1, tn), lambda i, j, k: (0, j)),
    ]
    args = [x_bf, w_bf, b]
    has_residual = residual is not None
    if has_residual:
        in_specs.append(pl.BlockSpec((tm, tn), lambda i, j, k: (i, j)))
        args.append(residual)

    return pl.pallas_call(
        functools.partial(_linear_kernel, activation=activation,
                          has_residual=has_residual),
        out_shape=jax.ShapeDtypeStruct((M, N), out_dtype),
        grid=grid,
        in_specs=in_specs,
        out_specs=pl.BlockSpec((tm, tn), lambda i, j, k: (i, j)),
        scratch_shapes=[pltpu.VMEM((tm, tn), jnp.float32)],
        compiler_params=pltpu.CompilerParams(
            dimension_semantics=("parallel", "parallel", "arbitrary"),
            vmem_limit_bytes=_VMEM_LIMIT),
    )(*args)


# -------------------------------------------- fused out-proj + residual + LayerNorm kernel
def _outproj_ln_kernel(x_ref, w_ref, b_ref, r_ref, g_ref, bt_ref,
                       o32_ref, obf_ref, acc_ref):
    """xn = LayerNorm(ctx @ Wo + bo + residual); emits f32 (residual stream) + bf16 copy."""
    k = pl.program_id(1)

    @pl.when(k == 0)
    def _():
        acc_ref[...] = jnp.zeros_like(acc_ref)

    acc_ref[...] += jnp.dot(x_ref[...], w_ref[...], preferred_element_type=jnp.float32)

    @pl.when(k == pl.num_programs(1) - 1)
    def _():
        z = acc_ref[...] + b_ref[...] + r_ref[...]
        mu = jnp.mean(z, axis=-1, keepdims=True)
        var = jnp.mean((z - mu) ** 2, axis=-1, keepdims=True)
        xn = (z - mu) * lax.rsqrt(var + LN_EPS) * g_ref[...] + bt_ref[...]
        o32_ref[...] = xn
        obf_ref[...] = xn.astype(jnp.bfloat16)


def outproj_add_ln_pallas(x, w, b, residual, gamma, beta):
    """Fused out-projection + residual add + LayerNorm (norm2). N is not tiled (full E)."""
    M, K = x.shape
    K2, E = w.shape
    assert K == K2
    # Keep the (tm, E) f32 accumulator around ~4 MiB so the double-buffered residual /
    # dual outputs fit even v7x's 64 MiB VMEM at large E.
    tm_target = min(512, max(16, (4 * 1024 * 1024) // max(1, 4 * E)))
    tm = _pick_tile(M, tm_target, 16)
    tk = _pick_tile(K, 256, 128)
    grid = (M // tm, K // tk)

    x_bf = x.astype(jnp.bfloat16)
    w_bf = w.astype(jnp.bfloat16)

    return pl.pallas_call(
        _outproj_ln_kernel,
        out_shape=(jax.ShapeDtypeStruct((M, E), jnp.float32),
                   jax.ShapeDtypeStruct((M, E), jnp.bfloat16)),
        grid=grid,
        in_specs=[
            pl.BlockSpec((tm, tk), lambda i, k: (i, k)),
            pl.BlockSpec((tk, E), lambda i, k: (k, 0)),
            pl.BlockSpec((1, E), lambda i, k: (0, 0)),
            pl.BlockSpec((tm, E), lambda i, k: (i, 0)),   # fetched once per i (index const in k)
            pl.BlockSpec((1, E), lambda i, k: (0, 0)),
            pl.BlockSpec((1, E), lambda i, k: (0, 0)),
        ],
        out_specs=(pl.BlockSpec((tm, E), lambda i, k: (i, 0)),
                   pl.BlockSpec((tm, E), lambda i, k: (i, 0))),
        scratch_shapes=[pltpu.VMEM((tm, E), jnp.float32)],
        compiler_params=pltpu.CompilerParams(
            dimension_semantics=("parallel", "arbitrary"),
            vmem_limit_bytes=_VMEM_LIMIT),
    )(x_bf, w_bf, b, residual, gamma, beta)


# --------------------------------------------------------------- flash attention kernel
def _flash_kernel(*refs, scale, causal):
    """Online-softmax attention for one (batch*head, q-tile); k-tiles on the last grid axis.

    causal=True: mask generated in-kernel from broadcasted_iota (no mask stream from HBM)
                 and fully-masked k-tiles are skipped.
    causal=False: an additive (tq, tk) attention-mask tile is streamed from HBM.
    """
    if causal:
        pb_ref, q_ref, k_ref, v_ref, o_ref, m_sc, l_sc, acc_sc = refs
        am_ref = None
    else:
        pb_ref, q_ref, k_ref, v_ref, am_ref, o_ref, m_sc, l_sc, acc_sc = refs

    qi = pl.program_id(1)
    ki = pl.program_id(2)
    tq = q_ref.shape[1]
    tk = k_ref.shape[1]

    @pl.when(ki == 0)
    def _():
        m_sc[...] = jnp.full(m_sc.shape, MASK_INIT, m_sc.dtype)
        l_sc[...] = jnp.zeros_like(l_sc)
        acc_sc[...] = jnp.zeros_like(acc_sc)

    def tile_body():
        q = q_ref[0]                                   # (tq, Dh) bf16
        k = k_ref[0]                                   # (tk, Dh) bf16
        v = v_ref[0]                                   # (tk, Dh) bf16

        # scores: contract over Dh without materializing a transpose
        s = lax.dot_general(q, k, (((1,), (1,)), ((), ())),
                            preferred_element_type=jnp.float32) * scale
        s = s + pb_ref[0]                              # key-padding bias, (1, tk)
        if causal:
            row = qi * tq + lax.broadcasted_iota(jnp.int32, (tq, tk), 0)
            col = ki * tk + lax.broadcasted_iota(jnp.int32, (tq, tk), 1)
            s = jnp.where(col <= row, s, NEG_INF)      # VPU compare/select, no HBM mask
        else:
            s = s + am_ref[...]                        # streamed additive mask tile

        m_prev = m_sc[...]
        m_new = jnp.maximum(m_prev, jnp.max(s, axis=-1, keepdims=True))
        alpha = jnp.exp(m_prev - m_new)
        p = jnp.exp(s - m_new)
        l_sc[...] = alpha * l_sc[...] + jnp.sum(p, axis=-1, keepdims=True)
        acc_sc[...] = alpha * acc_sc[...] + jnp.dot(
            p.astype(v.dtype), v, preferred_element_type=jnp.float32)
        m_sc[...] = m_new

    if causal:
        # Skip k-tiles that lie entirely above the causal diagonal (~2x compute saving).
        pl.when(ki * tk < (qi + 1) * tq)(tile_body)
    else:
        tile_body()

    @pl.when(ki == pl.num_programs(2) - 1)
    def _():
        # exact division (review note: approx reciprocal loosened parity)
        o_ref[0] = (acc_sc[...] / l_sc[...]).astype(o_ref.dtype)


def flash_attention_pallas(q, k, v, pad_bias, num_heads, *, attn_mask=None,
                           causal=True, tq_target=256, tk_target=None):
    """q,k,v: (B*H, S, Dh) bf16. pad_bias: (B,S) additive f32. Returns bf16 context."""
    if tk_target is None:
        tk_target = _FLASH_TK_TARGET
    BH, S, Dh = q.shape
    H = num_heads
    B = BH // H
    tq = _pick_tile(S, tq_target, 16)     # big q tile -> fewer K/V re-reads
    tk = _pick_tile(S, tk_target, 128)
    grid = (BH, S // tq, S // tk)
    scale = 1.0 / math.sqrt(Dh)

    pad_bias3 = pad_bias.reshape(B, 1, S)          # thin (1,1,tk) blocks, indexed by batch

    in_specs = [
        pl.BlockSpec((1, 1, tk), lambda bh, qi, ki: (bh // H, 0, ki)),
        pl.BlockSpec((1, tq, Dh), lambda bh, qi, ki: (bh, qi, 0)),
        pl.BlockSpec((1, tk, Dh), lambda bh, qi, ki: (bh, ki, 0)),
        pl.BlockSpec((1, tk, Dh), lambda bh, qi, ki: (bh, ki, 0)),
    ]
    args = [pad_bias3, q, k, v]
    if not causal:
        assert attn_mask is not None
        in_specs.append(pl.BlockSpec((tq, tk), lambda bh, qi, ki: (qi, ki)))
        args.append(attn_mask)

    return pl.pallas_call(
        functools.partial(_flash_kernel, scale=scale, causal=causal),
        out_shape=jax.ShapeDtypeStruct((BH, S, Dh), jnp.bfloat16),   # bf16 writeback
        grid=grid,
        in_specs=in_specs,
        out_specs=pl.BlockSpec((1, tq, Dh), lambda bh, qi, ki: (bh, qi, 0)),
        scratch_shapes=[
            pltpu.VMEM((tq, 1), jnp.float32),       # running max
            pltpu.VMEM((tq, 1), jnp.float32),       # running denom
            pltpu.VMEM((tq, Dh), jnp.float32),      # output accumulator
        ],
        compiler_params=pltpu.CompilerParams(
            dimension_semantics=("parallel", "parallel", "arbitrary"),
            vmem_limit_bytes=_VMEM_LIMIT),
    )(*args)


# ------------------------------------------------------------------------ model (glue)
def sinusoidal_pe(max_len, emb_dim):
    pos = jnp.arange(max_len, dtype=jnp.float32)[:, None]
    i = jnp.arange(0, emb_dim, 2, dtype=jnp.float32)[None, :]
    div = jnp.exp(-math.log(10000.0) * i / emb_dim)
    pe = jnp.zeros((max_len, emb_dim), jnp.float32)
    pe = pe.at[:, 0::2].set(jnp.sin(pos * div))
    pe = pe.at[:, 1::2].set(jnp.cos(pos * div))
    return pe


def decoder_layer_pallas(x2d, attn_mask, pad_bias, lp, num_heads, B, S, causal):
    E = x2d.shape[1]
    Dh = E // num_heads

    # joint QKV projection (bf16 output: only consumed as MXU operands)
    qkv = linear_pallas(x2d, lp['wqkv'], lp['bqkv'], out_dtype=jnp.bfloat16)
    q, k, v = qkv[:, :E], qkv[:, E:2 * E], qkv[:, 2 * E:]

    # TODO(synk): for Dh % 128 == 0 the head split can be folded into the flash
    # BlockSpec index_maps (no transposes); at this toy Dh it stays bf16 XLA glue.
    def to_heads(t):  # (B*S, E) -> (B*H, S, Dh)
        return t.reshape(B, S, num_heads, Dh).transpose(0, 2, 1, 3) \
                .reshape(B * num_heads, S, Dh)

    ctx = flash_attention_pallas(to_heads(q), to_heads(k), to_heads(v),
                                 pad_bias, num_heads,
                                 attn_mask=attn_mask, causal=causal)
    ctx2d = ctx.reshape(B, num_heads, S, Dh).transpose(0, 2, 1, 3).reshape(B * S, E)

    # fused: out-projection + bias + residual(x2d) + LayerNorm(norm2); dual f32/bf16 out
    xn_f32, xn_bf16 = outproj_add_ln_pallas(ctx2d, lp['wo'], lp['bo'], x2d,
                                            lp['ln2_g'], lp['ln2_b'])
    h = linear_pallas(xn_bf16, lp['ff_w1'], lp['ff_b1'], activation='gelu',
                      out_dtype=jnp.bfloat16)                            # FFN1 + GELU, bf16
    x_out = linear_pallas(h, lp['ff_w2'], lp['ff_b2'], residual=xn_f32)  # FFN2 + residual
    return x_out


def llama_forward_pallas(params, input_ids, attention_mask, padding_mask, num_heads,
                         *, causal=True):
    B, S = input_ids.shape
    E = params['embedding'].shape[1]
    # embedding lookup + positional encoding (host-side glue; gather has no tiled hot path)
    x = jnp.take(params['embedding'], input_ids, axis=0).astype(jnp.float32)
    x = x + params['pe'][:S][None, :, :]
    x2d = x.reshape(B * S, E)

    pad_bias = jnp.where(padding_mask, NEG_INF, 0.0).astype(jnp.float32)     # (B, S) f32
    # causal=True: the given attention_mask is the standard causal mask -> generated
    # in-kernel, nothing streamed.  causal=False: stream the arbitrary additive mask.
    attn_mask = None if causal else attention_mask.astype(jnp.float32)

    for lp in params['layers']:
        x2d = decoder_layer_pallas(x2d, attn_mask, pad_bias, lp, num_heads, B, S, causal)

    logits = linear_pallas(x2d, params['cls_w'], params['cls_b'], tn_target=512)
    return {'logits': logits.reshape(B, S, -1)}


# ------------------------------------------------------------------ pure-JAX reference
def llama_forward_ref(params, input_ids, attention_mask, padding_mask, num_heads,
                      mm_dtype=jnp.float32):
    """Faithful reference; mm_dtype=bfloat16 mirrors the kernels' MXU operand dtype."""
    def mm(a, b):
        return jnp.dot(a.astype(mm_dtype), b.astype(mm_dtype),
                       preferred_element_type=jnp.float32)

    B, S = input_ids.shape
    E = params['embedding'].shape[1]
    Dh = E // num_heads
    x = jnp.take(params['embedding'], input_ids, axis=0).astype(jnp.float32)
    x = x + params['pe'][:S][None, :, :]
    pad = jnp.where(padding_mask, NEG_INF, 0.0).astype(jnp.float32)
    bias = attention_mask[None, :, :] + pad[:, None, :]
    for lp in params['layers']:
        xf = x.reshape(B * S, E)
        qkv = mm(xf, lp['wqkv']) + lp['bqkv']
        q, k, v = (qkv[:, i * E:(i + 1) * E].reshape(B, S, num_heads, Dh) for i in range(3))
        s = jnp.einsum('bqhd,bkhd->bhqk', q.astype(mm_dtype), k.astype(mm_dtype),
                       preferred_element_type=jnp.float32) / math.sqrt(Dh) + bias[:, None]
        p = jax.nn.softmax(s, axis=-1)
        ctx = jnp.einsum('bhqk,bkhd->bqhd', p.astype(mm_dtype), v.astype(mm_dtype),
                         preferred_element_type=jnp.float32).reshape(B * S, E)
        attn = mm(ctx, lp['wo']) + lp['bo']
        x1 = xf + attn
        mu = jnp.mean(x1, -1, keepdims=True)
        var = jnp.mean((x1 - mu) ** 2, -1, keepdims=True)
        xn = (x1 - mu) * lax.rsqrt(var + LN_EPS) * lp['ln2_g'] + lp['ln2_b']
        h = _gelu_exact(mm(xn, lp['ff_w1']) + lp['ff_b1'])
        ff = mm(h, lp['ff_w2']) + lp['ff_b2']
        x = (xn + ff).reshape(B, S, E)
    logits = mm(x.reshape(B * S, E), params['cls_w']) + params['cls_b']
    return {'logits': logits.reshape(B, S, -1)}


# ------------------------------------------------------------------------ params
def init_params(key, vocab, emb_dim, num_layers, ff_dim, max_len):
    def nrm(k, shape, scale=0.02):
        return scale * jax.random.normal(k, shape, jnp.float32)

    keys = jax.random.split(key, 2 + 6 * num_layers)
    params = {
        'embedding': nrm(keys[0], (vocab, emb_dim), 1.0),
        'pe': sinusoidal_pe(max_len, emb_dim),
        'cls_w': nrm(keys[1], (emb_dim, vocab)),
        'cls_b': jnp.zeros((1, vocab), jnp.float32),
        'layers': [],
    }
    for l in range(num_layers):
        k = keys[2 + 6 * l: 2 + 6 * (l + 1)]
        params['layers'].append({
            'wqkv': nrm(k[0], (emb_dim, 3 * emb_dim)),
            'bqkv': nrm(k[1], (1, 3 * emb_dim)),
            'wo':   nrm(k[2], (emb_dim, emb_dim)),
            'bo':   jnp.zeros((1, emb_dim), jnp.float32),
            # norm1 params exist in the torch module but its output is discarded -> omitted
            'ln2_g': jnp.ones((1, emb_dim), jnp.float32),
            'ln2_b': jnp.zeros((1, emb_dim), jnp.float32),
            'ff_w1': nrm(k[3], (emb_dim, ff_dim)),
            'ff_b1': nrm(k[4], (1, ff_dim)),
            'ff_w2': nrm(k[5], (ff_dim, emb_dim)),
            'ff_b2': jnp.zeros((1, emb_dim), jnp.float32),
        })
    return params


# ------------------------------------------------------------------------ main
if __name__ == "__main__":
    B, S = 2, 8
    EMB, HEADS, LAYERS, EXP = 32, 4, 2, 4
    VOCAB = 512                      # small vocab (constructor arg) for the synthetic test
    FF = EXP * EMB

    key = jax.random.PRNGKey(0)
    kp, kid = jax.random.split(key)
    params = init_params(kp, VOCAB, EMB, LAYERS, FF, max_len=64)

    input_ids = jax.random.randint(kid, (B, S), 0, VOCAB, dtype=jnp.int32)
    # causal additive attention mask (S, S): 0 = attend, NEG_INF = masked
    causal_mask = jnp.where(jnp.tril(jnp.ones((S, S), jnp.bool_)),
                            0.0, NEG_INF).astype(jnp.float32)
    # key padding mask (B, S): True = padded token (last 2 tokens of batch 1)
    padding_mask = jnp.zeros((B, S), jnp.bool_).at[1, -2:].set(True)

    # Reference that mirrors the kernels' bf16 MXU operands (f32 accumulation/statistics)
    ref = llama_forward_ref(params, input_ids, causal_mask, padding_mask, HEADS,
                            mm_dtype=jnp.bfloat16)['logits']

    # Fast path: causal mask generated in-kernel (nothing streamed, masked tiles skipped).
    out = llama_forward_pallas(params, input_ids, causal_mask, padding_mask, HEADS,
                               causal=True)
    logits = jax.block_until_ready(out['logits'])
    assert logits.shape == (B, S, VOCAB)
    assert bool(jnp.all(jnp.isfinite(logits)))
    assert jnp.allclose(logits, ref, atol=1e-2, rtol=1e-2), "causal path mismatch vs reference"

    # General path: arbitrary additive attention mask streamed as (tq, tk) tiles.
    out2 = llama_forward_pallas(params, input_ids, causal_mask, padding_mask, HEADS,
                                causal=False)
    logits2 = jax.block_until_ready(out2['logits'])
    assert jnp.allclose(logits2, ref, atol=1e-2, rtol=1e-2), "masked path mismatch vs reference"

    # TODO(synk): dropout layers (p=0.1) are identity here (eval-mode semantics).
    print("KERNEL_OK")
</pallas_src>

<mosaic_0001>
module attributes {stable_mosaic.version = 11 : i64} {
  func.func @_linear_kernel(%arg0: i32, %arg1: i32, %arg2: i32, %arg3: memref<16x32xbf16, #tpu.memory_space<vmem>>, %arg4: memref<32x96xbf16, #tpu.memory_space<vmem>>, %arg5: memref<1x96xf32, #tpu.memory_space<vmem>>, %arg6: memref<16x96xbf16, #tpu.memory_space<vmem>>, %arg7: memref<16x96xf32, #tpu.memory_space<vmem>>) attributes {dimension_semantics = [#tpu.dimension_semantics<parallel>, #tpu.dimension_semantics<parallel>, #tpu.dimension_semantics<arbitrary>], iteration_bounds = array<i64: 1, 1, 1>, scalar_prefetch = 0 : i64, scratch_operands = 1 : i64, tpu.core_type = #tpu.core_type<tc>, window_params = [{transform_indices = @transform_0, window_bounds = array<i64: 16, 32>}, {transform_indices = @transform_1, window_bounds = array<i64: 32, 96>}, {transform_indices = @transform_2, window_bounds = array<i64: 1, 96>}, {transform_indices = @transform_3, window_bounds = array<i64: 16, 96>}]} {
    %c0_i32 = arith.constant 0 : i32
    %0 = arith.cmpi eq, %arg2, %c0_i32 : i32
    %1 = arith.extui %0 : i1 to i32
    %c0_i32_0 = arith.constant 0 : i32
    %2 = arith.cmpi ne, %1, %c0_i32_0 : i32
    scf.if %2 {
      %cst_10 = arith.constant 0.000000e+00 : f32
      %12 = vector.broadcast %cst_10 : f32 to vector<16x96xf32>
      %c0_11 = arith.constant 0 : index
      %c0_12 = arith.constant 0 : index
      %13 = vector.load %arg7[%c0_11, %c0_12] : memref<16x96xf32, #tpu.memory_space<vmem>>, vector<16x96xf32>
      tpu.vector_store %arg7[%c0_11, %c0_12], %12 {strides = array<i32>} : memref<16x96xf32, #tpu.memory_space<vmem>>, vector<16x96xf32>,
    } else {
    }
    %c0 = arith.constant 0 : index
    %c0_1 = arith.constant 0 : index
    %3 = vector.load %arg7[%c0, %c0_1] : memref<16x96xf32, #tpu.memory_space<vmem>>, vector<16x96xf32>
    %c0_2 = arith.constant 0 : index
    %c0_3 = arith.constant 0 : index
    %4 = vector.load %arg3[%c0_2, %c0_3] : memref<16x32xbf16, #tpu.memory_space<vmem>>, vector<16x32xbf16>
    %c0_4 = arith.constant 0 : index
    %c0_5 = arith.constant 0 : index
    %5 = vector.load %arg4[%c0_4, %c0_5] : memref<32x96xbf16, #tpu.memory_space<vmem>>, vector<32x96xbf16>
    %cst = arith.constant dense<0.000000e+00> : vector<16x96xf32>
    %6 = tpu.matmul %4, %5, %cst {dimension_numbers = #tpu.dot_dimension_numbers<[1], [0], [0], [1], [0, 0, 1, 1], [], []>} : vector<16x32xbf16>, vector<32x96xbf16>, vector<16x96xf32> -> vector<16x96xf32>
    %7 = arith.addf %3, %6 : vector<16x96xf32>
    %c0_6 = arith.constant 0 : index
    %c0_7 = arith.constant 0 : index
    %8 = vector.load %arg7[%c0_6, %c0_7] : memref<16x96xf32, #tpu.memory_space<vmem>>, vector<16x96xf32>
    tpu.vector_store %arg7[%c0_6, %c0_7], %7 {strides = array<i32>} : memref<16x96xf32, #tpu.memory_space<vmem>>, vector<16x96xf32>,
    %c0_i32_8 = arith.constant 0 : i32
    %9 = arith.cmpi eq, %arg2, %c0_i32_8 : i32
    %10 = arith.extui %9 : i1 to i32
    %c0_i32_9 = arith.constant 0 : i32
    %11 = arith.cmpi ne, %10, %c0_i32_9 : i32
    scf.if %11 {
      %c0_10 = arith.constant 0 : index
      %c0_11 = arith.constant 0 : index
      %12 = vector.load %arg7[%c0_10, %c0_11] : memref<16x96xf32, #tpu.memory_space<vmem>>, vector<16x96xf32>
      %c0_12 = arith.constant 0 : index
      %c0_13 = arith.constant 0 : index
      %13 = vector.load %arg5[%c0_12, %c0_13] : memref<1x96xf32, #tpu.memory_space<vmem>>, vector<1x96xf32>
      %14 = vector.broadcast %13 : vector<1x96xf32> to vector<16x96xf32>
      %15 = arith.addf %12, %14 : vector<16x96xf32>
      %16 = arith.truncf %15 : vector<16x96xf32> to vector<16x96xbf16>
      %c0_14 = arith.constant 0 : index
      %c0_15 = arith.constant 0 : index
      %17 = vector.load %arg6[%c0_14, %c0_15] : memref<16x96xbf16, #tpu.memory_space<vmem>>, vector<16x96xbf16>
      tpu.vector_store %arg6[%c0_14, %c0_15], %16 {strides = array<i32>} : memref<16x96xbf16, #tpu.memory_space<vmem>>, vector<16x96xbf16>,
    } else {
    }
    return
  }
  func.func @transform_0(%arg0: i32, %arg1: i32, %arg2: i32) -> (i32, i32) {
    %c0_i32 = arith.constant 0 : i32
    return %arg0, %arg2 : i32, i32
  }
  func.func @transform_1(%arg0: i32, %arg1: i32, %arg2: i32) -> (i32, i32) {
    %c0_i32 = arith.constant 0 : i32
    return %arg2, %arg1 : i32, i32
  }
  func.func @transform_2(%arg0: i32, %arg1: i32, %arg2: i32) -> (i32, i32) {
    %c0_i32 = arith.constant 0 : i32
    %c0_i32_0 = arith.constant 0 : i32
    return %c0_i32, %arg1 : i32, i32
  }
  func.func @transform_3(%arg0: i32, %arg1: i32, %arg2: i32) -> (i32, i32) {
    %c0_i32 = arith.constant 0 : i32
    return %arg0, %arg1 : i32, i32
  }
}

</mosaic_0001>

<llo_original>
// kernel: tpu_custom_call.1
$region0: #{tpu_custom_call.1}
  #allocation0 [shape = 'u32[]', space=smem, size = 0x4, offset = 0x4, fixed_abs, tag = 'smem constant byte address 0x4 - core index']
  #allocation1 [shape = 'u32[144,128]{1,0:T(1,128)}', space=vmem, size = 0x12000, scoped, tag = 'internal scratch']
  #allocation2 [shape = 'f32[16,96]{1,0:T(8,128)}', space=vmem, size = 0x2000, scoped, tag = 'scratch operand']
  %s0 = inlined_call_operand.hbm [shape: bf16[16,32], index: 0, kind: input, shape index: {}]
  %s1 = inlined_call_operand.hbm [shape: bf16[32,96], index: 1, kind: input, shape index: {}]
  %s2 = inlined_call_operand.vmem [shape: f32[1,96], index: 2, kind: input, shape index: {}]
  %s3 = inlined_call_operand.hbm [shape: bf16[16,96], index: 3, kind: output, shape index: {}]
  %s4 = sld [smem:[#allocation0]]
  $region38: #{tpu_custom_call.1} parent=0
    _
  %s6 = ssub.s32 1, %s4
  %s7 = scalar_select 0, %s6, %s4
  $region1: #{tpu_custom_call.1} parent=0
    #allocation3 [shape = 'u8[4096]{0}', space=vmem, size = 0x1000, scoped, tag = 'input window, operand 0, single buffered']
    #allocation4 [shape = 's32[1]{0}', space=sflag, size = 0x4, scoped, tag = 'scoped memory for tpu_custom_call.1']
    #allocation5 [shape = 's32[1]{0}', space=sflag, size = 0x4, scoped, tag = 'scoped memory for tpu_custom_call.1']
    #allocation6 [shape = 'u8[8192]{0}', space=vmem, size = 0x2000, scoped, tag = 'input window, operand 1, single buffered']
    #allocation7 [shape = 's32[1]{0}', space=sflag, size = 0x4, scoped, tag = 'scoped memory for tpu_custom_call.1']
    #allocation8 [shape = 'u8[4096]{0}', space=vmem, size = 0x1000, scoped, tag = 'output window, operand 0, single buffered']
    %8 = vsyncpa [#allocation4], 0
    %9 = vsyncpa [#allocation7], 0
    %10 = vsyncpa [#allocation5], 0
    // Predicated region
    $region2: #{tpu_custom_call.1} parent=1 // pred_check
      _
    $region3: #{tpu_custom_call.1} parent=1 // pred_check_branch
      %12 = sbr.rel (0) target = $region5
    $region4: #{tpu_custom_call.1} parent=1 // pred_region
      %s14 = ssub.s32 128, 128
      %15 = vsyncadd [#allocation4], %s14
      %s16 = sshll.u32 [#allocation3], 4
      %s17 = int_to_ptr.vmem [resolvable:$true] %s16
      %22 = dma.hbm_to_vmem [thread:$0]  %s0, 128, %s17, [#allocation4], 64, 64, 4
    $region5: #{tpu_custom_call.1} parent=1 // pred_fallthru
      _
    // Predicated region
    $region6: #{tpu_custom_call.1} parent=1 // pred_check
      _
    $region7: #{tpu_custom_call.1} parent=1 // pred_check_branch
      %24 = sbr.rel (0) target = $region9
    $region8: #{tpu_custom_call.1} parent=1 // pred_region
      %s26 = ssub.s32 256, 256
      %27 = vsyncadd [#allocation7], %s26
      %s28 = sshll.u32 [#allocation6], 4
      %s29 = int_to_ptr.vmem [resolvable:$true] %s28
      %34 = dma.hbm_to_vmem [thread:$0]  %s1, 256, %s29, [#allocation7], 64, 64, 4
    $region9: #{tpu_custom_call.1} parent=1 // pred_fallthru
      _
    // Predicated region
    $region10: #{tpu_custom_call.1} parent=1 // pred_check
      _
    $region11: #{tpu_custom_call.1} parent=1 // pred_check_branch
      %36 = sbr.rel (0) target = $region13
    $region12: #{tpu_custom_call.1} parent=1 // pred_region
      _
    $region13: #{tpu_custom_call.1} parent=1 // pred_fallthru
      _
    // Predicated region
    $region14: #{tpu_custom_call.1} parent=1 // pred_check
      _
    $region15: #{tpu_custom_call.1} parent=1 // pred_check_branch
      %38 = sbr.rel (0) target = $region17
    $region16: #{tpu_custom_call.1} parent=1 // pred_region
      %39 = dma.done [#allocation4], 128
    $region17: #{tpu_custom_call.1} parent=1 // pred_fallthru
      _
    // Predicated region
    $region18: #{tpu_custom_call.1} parent=1 // pred_check
      _
    $region19: #{tpu_custom_call.1} parent=1 // pred_check_branch
      %41 = sbr.rel (0) target = $region21
    $region20: #{tpu_custom_call.1} parent=1 // pred_region
      %42 = dma.done [#allocation7], 256
    $region21: #{tpu_custom_call.1} parent=1 // pred_fallthru
      _
    %p44 = scmp.eq.s32.totalorder 0, 0
    // Predicated region
    $region22: #{tpu_custom_call.1} parent=1 // pred_check
      %p45 = pneg %p44
    $region23: #{tpu_custom_call.1} parent=1 // pred_check_branch
      %47 = sbr.rel (%p45) target = $region25
    $region24: #{tpu_custom_call.1} parent=1 // pred_region
      %vm48 = vcmask 785408
      %49 = vst.msk [vmem:[#allocation2] sm:$0xff] %vm48, 0.0
      %50 = vst.msk [vmem:[#allocation2 + $0x8] sm:$0xff] %vm48, 0.0
    $region25: #{tpu_custom_call.1} parent=1 // pred_fallthru
      _
    %v51 = vld [vmem:[#allocation2] sm:$0xff]
    %v52 = vld [vmem:[#allocation2 + $0x8] sm:$0xff]
    %v53 = vld [vmem:[#allocation3] sm:$0xf]
    %v54 = vld [vmem:[#allocation3 + $0x4] sm:$0xf]
    %v55 = vld [vmem:[#allocation6] sm:$0xf]
    %v56 = vld [vmem:[#allocation6 + $0x4] sm:$0xf]
    %v57 = vld [vmem:[#allocation6 + $0x8] sm:$0xf]
    %v58 = vld [vmem:[#allocation6 + $0xc] sm:$0xf]
    %v61 = vunpack.c.l.b16 %v53
    %v62 = vunpack.c.l.b16 %v54
    %v63 = vpack.c.b16 %v62, %v61
    %v68 = vunpack.c.l.b16 %v55
    %v69 = vunpack.c.l.b16 %v56
    %v70 = vunpack.c.l.b16 %v57
    %v71 = vunpack.c.l.b16 %v58
    %v72 = vpack.c.b16 %v69, %v68
    %v73 = vpack.c.b16 %v71, %v70
    %vm76 = vcmask 261120
    %v78 = vsel %vm76, %v63, 0
    %80 = vmatprep.subr.bf16.mxu0 0
    %81 = vmatpush1.bf16.msra.mxu0 %v72
    %82 = vmatprep.subr.bf16.mxu0 0
    %83 = vmatpush1.bf16.msra.mxu0 %v73
    %84 = vmatprep.subr.bf16.mxu0 0
    %85 = vmatpush1.bf16.msra.mxu0 0
    %86 = vmatprep.subr.bf16.mxu0 0
    %87 = vmatpush1.bf16.msra.mxu0 0
    %88 = vmatprep.subr.bf16.mxu0 0
    %89 = vmatpush1.bf16.msra.mxu0 0
    %90 = vmatprep.subr.bf16.mxu0 0
    %91 = vmatpush1.bf16.msra.mxu0 0
    %92 = vmatprep.subr.bf16.mxu0 0
    %93 = vmatpush1.bf16.msra.mxu0 0
    %94 = vmatprep.subr.bf16.mxu0 0
    %95 = vmatpush1.bf16.msra.mxu0 0
    %96 = vmatprep.subr.bf16.mxu0 0
    %97 = vmatpush1.bf16.msra.mxu0 0
    %98 = vmatprep.subr.bf16.mxu0 0
    %99 = vmatpush1.bf16.msra.mxu0 0
    %100 = vmatprep.subr.bf16.mxu0 0
    %101 = vmatpush1.bf16.msra.mxu0 0
    %102 = vmatprep.subr.bf16.mxu0 0
    %103 = vmatpush1.bf16.msra.mxu0 0
    %104 = vmatprep.subr.bf16.mxu0 0
    %105 = vmatpush1.bf16.msra.mxu0 0
    %106 = vmatprep.subr.bf16.mxu0 0
    %107 = vmatpush1.bf16.msra.mxu0 0
    %108 = vmatprep.subr.bf16.mxu0 0
    %109 = vmatpush1.bf16.msra.mxu0 0
    %110 = vmatprep.subr.bf16.mxu0 0
    %111 = vmatpush1.bf16.msra.mxu0 0
    %112 = vmatprep.mubr.bf16.mxu0 0
    %113 = vmatmul.mubr.bf16.gmra.mrb[0].mxu0 %v78
    %v114 = vpop.f32.mrb[0].mxu0
    %v115 = vadd.f32 0.0, %v114
    %v116 = vpop.f32.mrb[0].mxu0
    %v117 = vpop.f32.mrb[0].mxu0
    %v118 = vadd.f32 0.0, %v117
    %v119 = vpop.f32.mrb[0].mxu0
    %120 = vdwg.mxu0
    %v121 = vadd.f32 %v51, %v115
    %v122 = vadd.f32 %v52, %v118
    %vm123 = vcmask 785408
    %124 = vst.msk [vmem:[#allocation2] sm:$0xff] %vm123, %v121
    %125 = vst.msk [vmem:[#allocation2 + $0x8] sm:$0xff] %vm123, %v122
    // Predicated region
    $region26: #{tpu_custom_call.1} parent=1 // pred_check
      %p126 = pneg %p44
    $region27: #{tpu_custom_call.1} parent=1 // pred_check_branch
      %128 = sbr.rel (%p126) target = $region29
    $region28: #{tpu_custom_call.1} parent=1 // pred_region
      %v129 = vld [vmem:[#allocation2] sm:$0xff]
      %v130 = vld [vmem:[#allocation2 + $0x8] sm:$0xff]
      %v131 = vld [vmem:[%s2] sm:$0x1]
      %v133 = vlaneseq
      %v134 = vshrl.u32 %v133, 7
      %v135 = vsub.s32 0, %v134
      %v136 = vrot.slane %v131, %v135
      %v138 = vadd.f32 %v129, %v136
      %v139 = vadd.f32 %v130, %v136
      %v140 = vpack.c.bf16 %v139, %v138
      %v142 = vunpack.c.l.b16 %v140
      %v143 = vunpack.c.h.b16 %v140
      %v144 = vpack.c.b16 %v142, %v142
      %v145 = vpack.c.b16 %v143, %v143
      %vm148 = vcmask 781312
      %149 = vst.msk [vmem:[#allocation8] sm:$0xf] %vm148, %v144
      %150 = vst.msk [vmem:[#allocation8 + $0x4] sm:$0xf] %vm148, %v145
    $region29: #{tpu_custom_call.1} parent=1 // pred_fallthru
      _
    // Predicated region
    $region30: #{tpu_custom_call.1} parent=1 // pred_check
      _
    $region31: #{tpu_custom_call.1} parent=1 // pred_check_branch
      %152 = sbr.rel (0) target = $region33
    $region32: #{tpu_custom_call.1} parent=1 // pred_region
      %s154 = ssub.s32 128, 128
      %155 = vsyncadd [#allocation5], %s154
      %s156 = sshll.u32 [#allocation8], 4
      %s157 = int_to_ptr.vmem [resolvable:$true] %s156
      %162 = dma.vmem_to_hbm [thread:$0]  %s157, 128, %s3, [#allocation5], 64, 64, 4
    $region33: #{tpu_custom_call.1} parent=1 // pred_fallthru
      _
    // Predicated region
    $region34: #{tpu_custom_call.1} parent=1 // pred_check
      _
    $region35: #{tpu_custom_call.1} parent=1 // pred_check_branch
      %164 = sbr.rel (0) target = $region37
    $region36: #{tpu_custom_call.1} parent=1 // pred_region
      %165 = dma.done [#allocation5], 128
    $region37: #{tpu_custom_call.1} parent=1 // pred_fallthru
      _
    %166 = vsyncpa [#allocation4], 1
    %167 = vsyncpa [#allocation7], 1
    %168 = vsyncpa [#allocation5], 1

</llo_original>
